<compile_context>
chip_gen: v7x
topology: tpu7x:2x2x1
jax: 0.10.0
libtpu: 0.0.40
codegen_flags: <defaults>
</compile_context>

<pallas_src>
import functools

import jax
import jax.numpy as jnp
from jax import lax
from jax.experimental import pallas as pl
from jax.experimental.pallas import tpu as pltpu


# Transform ids understood by the kernel:
#   0 = brightness (x * 1.2)
#   1 = contrast   ((x - mean) * 1.5 + mean), mean taken per image
#   2 = invert     (1 - x)
#   3 = gamma      (x * x)

def _brightness(y):
    return y * jnp.float32(1.2)


def _contrast(y):
    # Rows are whole images (pixels flattened on the lane axis) -> per-image mean.
    m = jnp.mean(y, axis=-1, keepdims=True)
    return (y - m) * jnp.float32(1.5) + m


def _invert(y):
    return jnp.float32(1.0) - y


def _gamma(y):
    return y * y


def _apply_tid(t, y):
    """Dispatch on transform id t (traced int32 scalar) with nested lax.cond."""
    return lax.cond(
        t < 2,
        lambda v: lax.cond(t == 0, _brightness, _contrast, v),
        lambda v: lax.cond(t == 2, _invert, _gamma, v),
        y,
    )


def _random_apply_kernel(sched_ref, k_ref, x_ref, o_ref):
    """Apply sched_ref[0:k] transforms sequentially to a (rows, pixels) block."""
    x = x_ref[...].astype(jnp.float32)   # math in f32 (safe on v5e; store dtype kept)
    k = k_ref[0]
    max_num = sched_ref.shape[0]         # static, small (<= 4 here)

    y = x
    for step in range(max_num):          # statically unrolled; steps >= k are identity
        t = sched_ref[step]
        y = lax.cond(step < k, functools.partial(_apply_tid, t), lambda v: v, y)

    o_ref[...] = y.astype(o_ref.dtype)


def _choose_row_tile(n_rows, n_cols, itemsize, target_bytes=2 * 1024 * 1024):
    """Largest row tile (multiple of 8, or the full batch) near target_bytes.

    ~2 MiB blocks keep input+output double-buffering well under the 32 MiB
    scoped-VMEM default (and v7x's 64 MiB physical VMEM) while being large
    enough to amortize per-grid-step overhead.
    """
    if n_rows * n_cols * itemsize <= target_bytes:
        return n_rows
    rows = (target_bytes // (n_cols * itemsize)) // 8 * 8
    rows = max(8, int(rows))
    return int(min(rows, n_rows))


@jax.jit
def _random_apply_fused(img, sched, k):
    """Apply the fused random transform schedule to an NCHW image batch."""
    n, c, h, w = img.shape
    pixels = c * h * w
    x2d = img.reshape(n, pixels)            # lane-dense: last dim -> 128-lane axis
    tile_rows = _choose_row_tile(n, pixels, x2d.dtype.itemsize)
    grid = (pl.cdiv(n, tile_rows),)

    sched = sched.astype(jnp.int32)
    k = jnp.reshape(k, (1,)).astype(jnp.int32)

    out2d = pl.pallas_call(
        _random_apply_kernel,
        out_shape=jax.ShapeDtypeStruct(x2d.shape, x2d.dtype),
        grid_spec=pltpu.PrefetchScalarGridSpec(
            num_scalar_prefetch=2,                         # schedule + k -> SMEM
            grid=grid,
            in_specs=[pl.BlockSpec((tile_rows, pixels),
                                   lambda i, sched, k: (i, 0))],
            out_specs=pl.BlockSpec((tile_rows, pixels),
                                   lambda i, sched, k: (i, 0)),
        ),
        compiler_params=pltpu.CompilerParams(
            dimension_semantics=("parallel",)),            # shards across v7x's 2 TCs
    )(sched, k, x2d)
    return out2d.reshape(n, c, h, w)


class RandomApply:
    """JAX/Pallas port of the PyTorch RandomApply module.

    transform_list is a list of integer transform ids understood by the Pallas
    kernel (0=brightness, 1=contrast, 2=invert, 3=gamma).
    """

    def __init__(self, transform_list, max_num=4):
        self.transform_list = list(transform_list)
        self.max_num = min(max_num, len(self.transform_list))

    def __call__(self, img, key):
        key_perm, key_k = jax.random.split(key)
        # torch.randperm(len(transform_list)) -- stays on device.
        perm = jax.random.permutation(key_perm, len(self.transform_list))
        # torch.randint(1, max_num + 1, [1]) -- stays on device (no host sync).
        k = jax.random.randint(key_k, (), 1, self.max_num + 1)
        # Permuted transform ids; the kernel only consumes the first k entries,
        # and k <= max_num, so a static max_num-slice is sufficient.
        tids = jnp.asarray(self.transform_list, dtype=jnp.int32)[perm]
        sched = tids[: self.max_num]
        return _random_apply_fused(img, sched, k)

    def __repr__(self):
        format_string = self.__class__.__name__ + '('
        for t in self.transform_list:
            format_string += f'\n    transform_id={t}'
        format_string += '\n)'
        return format_string


if __name__ == "__main__":
    key = jax.random.PRNGKey(0)
    key_img, key_apply = jax.random.split(key)

    # Small deterministic input, NCHW.
    x = jax.random.uniform(key_img, (2, 4, 16, 16), dtype=jnp.float32)

    module = RandomApply(transform_list=[0, 1, 2, 3], max_num=4)
    out = module(x, key_apply)
    out = jax.block_until_ready(out)

    assert out.shape == x.shape and out.dtype == x.dtype
    print("KERNEL_OK")
</pallas_src>

<mosaic_0001>
module attributes {stable_mosaic.version = 11 : i64} {
  func.func @_random_apply_kernel(%arg0: i32, %arg1: memref<4xi32, #tpu.memory_space<smem>>, %arg2: memref<1xi32, #tpu.memory_space<smem>>, %arg3: memref<2x1024xf32, #tpu.memory_space<vmem>>, %arg4: memref<2x1024xf32, #tpu.memory_space<vmem>>) attributes {dimension_semantics = [#tpu.dimension_semantics<parallel>], iteration_bounds = array<i64: 1>, scalar_prefetch = 2 : i64, scratch_operands = 0 : i64, tpu.core_type = #tpu.core_type<tc>, window_params = [{transform_indices = @transform_0, window_bounds = array<i64: 2, 1024>}, {transform_indices = @transform_1, window_bounds = array<i64: 2, 1024>}]} {
    %c0 = arith.constant 0 : index
    %c0_0 = arith.constant 0 : index
    %0 = vector.load %arg3[%c0, %c0_0] : memref<2x1024xf32, #tpu.memory_space<vmem>>, vector<2x1024xf32>
    %c0_1 = arith.constant 0 : index
    %1 = memref.load %arg2[%c0_1] : memref<1xi32, #tpu.memory_space<smem>>
    %c0_2 = arith.constant 0 : index
    %2 = memref.load %arg1[%c0_2] : memref<4xi32, #tpu.memory_space<smem>>
    %c0_i32 = arith.constant 0 : i32
    %3 = arith.cmpi sgt, %1, %c0_i32 : i32
    %4 = arith.extui %3 : i1 to i32
    %c0_i32_3 = arith.constant 0 : i32
    %5 = arith.cmpi ne, %4, %c0_i32_3 : i32
    %6 = scf.if %5 -> (vector<2x1024xf32>) {
      %c2_i32_9 = arith.constant 2 : i32
      %23 = arith.cmpi slt, %2, %c2_i32_9 : i32
      %24 = arith.extui %23 : i1 to i32
      %c0_i32_10 = arith.constant 0 : i32
      %25 = arith.cmpi ne, %24, %c0_i32_10 : i32
      %26 = scf.if %25 -> (vector<2x1024xf32>) {
        %c0_i32_11 = arith.constant 0 : i32
        %27 = arith.cmpi eq, %2, %c0_i32_11 : i32
        %28 = arith.extui %27 : i1 to i32
        %c0_i32_12 = arith.constant 0 : i32
        %29 = arith.cmpi ne, %28, %c0_i32_12 : i32
        %30 = scf.if %29 -> (vector<2x1024xf32>) {
          %cst = arith.constant 1.200000e+00 : f32
          %31 = vector.broadcast %cst : f32 to vector<2x1024xf32>
          %32 = arith.mulf %0, %31 : vector<2x1024xf32>
          scf.yield %32 : vector<2x1024xf32>
        } else {
          %cst = arith.constant dense<0.000000e+00> : vector<2xf32>
          %31 = vector.multi_reduction <add>, %0, %cst [1] : vector<2x1024xf32> to vector<2xf32>
          %32 = vector.shape_cast %31 : vector<2xf32> to vector<2x1xf32>
          %cst_13 = arith.constant 1.024000e+03 : f32
          %33 = vector.broadcast %cst_13 : f32 to vector<2x1xf32>
          %34 = arith.divf %32, %33 : vector<2x1xf32>
          %35 = vector.broadcast %34 : vector<2x1xf32> to vector<2x1024xf32>
          %36 = arith.subf %0, %35 : vector<2x1024xf32>
          %cst_14 = arith.constant 1.500000e+00 : f32
          %37 = vector.broadcast %cst_14 : f32 to vector<2x1024xf32>
          %38 = arith.mulf %36, %37 : vector<2x1024xf32>
          %39 = vector.broadcast %34 : vector<2x1xf32> to vector<2x1024xf32>
          %40 = arith.addf %38, %39 : vector<2x1024xf32>
          scf.yield %40 : vector<2x1024xf32>
        }
        scf.yield %30 : vector<2x1024xf32>
      } else {
        %c2_i32_11 = arith.constant 2 : i32
        %27 = arith.cmpi eq, %2, %c2_i32_11 : i32
        %28 = arith.extui %27 : i1 to i32
        %c0_i32_12 = arith.constant 0 : i32
        %29 = arith.cmpi ne, %28, %c0_i32_12 : i32
        %30 = scf.if %29 -> (vector<2x1024xf32>) {
          %cst = arith.constant 1.000000e+00 : f32
          %31 = vector.broadcast %cst : f32 to vector<2x1024xf32>
          %32 = arith.subf %31, %0 : vector<2x1024xf32>
          scf.yield %32 : vector<2x1024xf32>
        } else {
          %31 = arith.mulf %0, %0 : vector<2x1024xf32>
          scf.yield %31 : vector<2x1024xf32>
        }
        scf.yield %30 : vector<2x1024xf32>
      }
      scf.yield %26 : vector<2x1024xf32>
    } else {
      scf.yield %0 : vector<2x1024xf32>
    }
    %c1 = arith.constant 1 : index
    %7 = memref.load %arg1[%c1] : memref<4xi32, #tpu.memory_space<smem>>
    %c1_i32 = arith.constant 1 : i32
    %8 = arith.cmpi sgt, %1, %c1_i32 : i32
    %9 = arith.extui %8 : i1 to i32
    %c0_i32_4 = arith.constant 0 : i32
    %10 = arith.cmpi ne, %9, %c0_i32_4 : i32
    %11 = scf.if %10 -> (vector<2x1024xf32>) {
      %c2_i32_9 = arith.constant 2 : i32
      %23 = arith.cmpi slt, %7, %c2_i32_9 : i32
      %24 = arith.extui %23 : i1 to i32
      %c0_i32_10 = arith.constant 0 : i32
      %25 = arith.cmpi ne, %24, %c0_i32_10 : i32
      %26 = scf.if %25 -> (vector<2x1024xf32>) {
        %c0_i32_11 = arith.constant 0 : i32
        %27 = arith.cmpi eq, %7, %c0_i32_11 : i32
        %28 = arith.extui %27 : i1 to i32
        %c0_i32_12 = arith.constant 0 : i32
        %29 = arith.cmpi ne, %28, %c0_i32_12 : i32
        %30 = scf.if %29 -> (vector<2x1024xf32>) {
          %cst = arith.constant 1.200000e+00 : f32
          %31 = vector.broadcast %cst : f32 to vector<2x1024xf32>
          %32 = arith.mulf %6, %31 : vector<2x1024xf32>
          scf.yield %32 : vector<2x1024xf32>
        } else {
          %cst = arith.constant dense<0.000000e+00> : vector<2xf32>
          %31 = vector.multi_reduction <add>, %6, %cst [1] : vector<2x1024xf32> to vector<2xf32>
          %32 = vector.shape_cast %31 : vector<2xf32> to vector<2x1xf32>
          %cst_13 = arith.constant 1.024000e+03 : f32
          %33 = vector.broadcast %cst_13 : f32 to vector<2x1xf32>
          %34 = arith.divf %32, %33 : vector<2x1xf32>
          %35 = vector.broadcast %34 : vector<2x1xf32> to vector<2x1024xf32>
          %36 = arith.subf %6, %35 : vector<2x1024xf32>
          %cst_14 = arith.constant 1.500000e+00 : f32
          %37 = vector.broadcast %cst_14 : f32 to vector<2x1024xf32>
          %38 = arith.mulf %36, %37 : vector<2x1024xf32>
          %39 = vector.broadcast %34 : vector<2x1xf32> to vector<2x1024xf32>
          %40 = arith.addf %38, %39 : vector<2x1024xf32>
          scf.yield %40 : vector<2x1024xf32>
        }
        scf.yield %30 : vector<2x1024xf32>
      } else {
        %c2_i32_11 = arith.constant 2 : i32
        %27 = arith.cmpi eq, %7, %c2_i32_11 : i32
        %28 = arith.extui %27 : i1 to i32
        %c0_i32_12 = arith.constant 0 : i32
        %29 = arith.cmpi ne, %28, %c0_i32_12 : i32
        %30 = scf.if %29 -> (vector<2x1024xf32>) {
          %cst = arith.constant 1.000000e+00 : f32
          %31 = vector.broadcast %cst : f32 to vector<2x1024xf32>
          %32 = arith.subf %31, %6 : vector<2x1024xf32>
          scf.yield %32 : vector<2x1024xf32>
        } else {
          %31 = arith.mulf %6, %6 : vector<2x1024xf32>
          scf.yield %31 : vector<2x1024xf32>
        }
        scf.yield %30 : vector<2x1024xf32>
      }
      scf.yield %26 : vector<2x1024xf32>
    } else {
      scf.yield %6 : vector<2x1024xf32>
    }
    %c2 = arith.constant 2 : index
    %12 = memref.load %arg1[%c2] : memref<4xi32, #tpu.memory_space<smem>>
    %c2_i32 = arith.constant 2 : i32
    %13 = arith.cmpi sgt, %1, %c2_i32 : i32
    %14 = arith.extui %13 : i1 to i32
    %c0_i32_5 = arith.constant 0 : i32
    %15 = arith.cmpi ne, %14, %c0_i32_5 : i32
    %16 = scf.if %15 -> (vector<2x1024xf32>) {
      %c2_i32_9 = arith.constant 2 : i32
      %23 = arith.cmpi slt, %12, %c2_i32_9 : i32
      %24 = arith.extui %23 : i1 to i32
      %c0_i32_10 = arith.constant 0 : i32
      %25 = arith.cmpi ne, %24, %c0_i32_10 : i32
      %26 = scf.if %25 -> (vector<2x1024xf32>) {
        %c0_i32_11 = arith.constant 0 : i32
        %27 = arith.cmpi eq, %12, %c0_i32_11 : i32
        %28 = arith.extui %27 : i1 to i32
        %c0_i32_12 = arith.constant 0 : i32
        %29 = arith.cmpi ne, %28, %c0_i32_12 : i32
        %30 = scf.if %29 -> (vector<2x1024xf32>) {
          %cst = arith.constant 1.200000e+00 : f32
          %31 = vector.broadcast %cst : f32 to vector<2x1024xf32>
          %32 = arith.mulf %11, %31 : vector<2x1024xf32>
          scf.yield %32 : vector<2x1024xf32>
        } else {
          %cst = arith.constant dense<0.000000e+00> : vector<2xf32>
          %31 = vector.multi_reduction <add>, %11, %cst [1] : vector<2x1024xf32> to vector<2xf32>
          %32 = vector.shape_cast %31 : vector<2xf32> to vector<2x1xf32>
          %cst_13 = arith.constant 1.024000e+03 : f32
          %33 = vector.broadcast %cst_13 : f32 to vector<2x1xf32>
          %34 = arith.divf %32, %33 : vector<2x1xf32>
          %35 = vector.broadcast %34 : vector<2x1xf32> to vector<2x1024xf32>
          %36 = arith.subf %11, %35 : vector<2x1024xf32>
          %cst_14 = arith.constant 1.500000e+00 : f32
          %37 = vector.broadcast %cst_14 : f32 to vector<2x1024xf32>
          %38 = arith.mulf %36, %37 : vector<2x1024xf32>
          %39 = vector.broadcast %34 : vector<2x1xf32> to vector<2x1024xf32>
          %40 = arith.addf %38, %39 : vector<2x1024xf32>
          scf.yield %40 : vector<2x1024xf32>
        }
        scf.yield %30 : vector<2x1024xf32>
      } else {
        %c2_i32_11 = arith.constant 2 : i32
        %27 = arith.cmpi eq, %12, %c2_i32_11 : i32
        %28 = arith.extui %27 : i1 to i32
        %c0_i32_12 = arith.constant 0 : i32
        %29 = arith.cmpi ne, %28, %c0_i32_12 : i32
        %30 = scf.if %29 -> (vector<2x1024xf32>) {
          %cst = arith.constant 1.000000e+00 : f32
          %31 = vector.broadcast %cst : f32 to vector<2x1024xf32>
          %32 = arith.subf %31, %11 : vector<2x1024xf32>
          scf.yield %32 : vector<2x1024xf32>
        } else {
          %31 = arith.mulf %11, %11 : vector<2x1024xf32>
          scf.yield %31 : vector<2x1024xf32>
        }
        scf.yield %30 : vector<2x1024xf32>
      }
      scf.yield %26 : vector<2x1024xf32>
    } else {
      scf.yield %11 : vector<2x1024xf32>
    }
    %c3 = arith.constant 3 : index
    %17 = memref.load %arg1[%c3] : memref<4xi32, #tpu.memory_space<smem>>
    %c3_i32 = arith.constant 3 : i32
    %18 = arith.cmpi sgt, %1, %c3_i32 : i32
    %19 = arith.extui %18 : i1 to i32
    %c0_i32_6 = arith.constant 0 : i32
    %20 = arith.cmpi ne, %19, %c0_i32_6 : i32
    %21 = scf.if %20 -> (vector<2x1024xf32>) {
      %c2_i32_9 = arith.constant 2 : i32
      %23 = arith.cmpi slt, %17, %c2_i32_9 : i32
      %24 = arith.extui %23 : i1 to i32
      %c0_i32_10 = arith.constant 0 : i32
      %25 = arith.cmpi ne, %24, %c0_i32_10 : i32
      %26 = scf.if %25 -> (vector<2x1024xf32>) {
        %c0_i32_11 = arith.constant 0 : i32
        %27 = arith.cmpi eq, %17, %c0_i32_11 : i32
        %28 = arith.extui %27 : i1 to i32
        %c0_i32_12 = arith.constant 0 : i32
        %29 = arith.cmpi ne, %28, %c0_i32_12 : i32
        %30 = scf.if %29 -> (vector<2x1024xf32>) {
          %cst = arith.constant 1.200000e+00 : f32
          %31 = vector.broadcast %cst : f32 to vector<2x1024xf32>
          %32 = arith.mulf %16, %31 : vector<2x1024xf32>
          scf.yield %32 : vector<2x1024xf32>
        } else {
          %cst = arith.constant dense<0.000000e+00> : vector<2xf32>
          %31 = vector.multi_reduction <add>, %16, %cst [1] : vector<2x1024xf32> to vector<2xf32>
          %32 = vector.shape_cast %31 : vector<2xf32> to vector<2x1xf32>
          %cst_13 = arith.constant 1.024000e+03 : f32
          %33 = vector.broadcast %cst_13 : f32 to vector<2x1xf32>
          %34 = arith.divf %32, %33 : vector<2x1xf32>
          %35 = vector.broadcast %34 : vector<2x1xf32> to vector<2x1024xf32>
          %36 = arith.subf %16, %35 : vector<2x1024xf32>
          %cst_14 = arith.constant 1.500000e+00 : f32
          %37 = vector.broadcast %cst_14 : f32 to vector<2x1024xf32>
          %38 = arith.mulf %36, %37 : vector<2x1024xf32>
          %39 = vector.broadcast %34 : vector<2x1xf32> to vector<2x1024xf32>
          %40 = arith.addf %38, %39 : vector<2x1024xf32>
          scf.yield %40 : vector<2x1024xf32>
        }
        scf.yield %30 : vector<2x1024xf32>
      } else {
        %c2_i32_11 = arith.constant 2 : i32
        %27 = arith.cmpi eq, %17, %c2_i32_11 : i32
        %28 = arith.extui %27 : i1 to i32
        %c0_i32_12 = arith.constant 0 : i32
        %29 = arith.cmpi ne, %28, %c0_i32_12 : i32
        %30 = scf.if %29 -> (vector<2x1024xf32>) {
          %cst = arith.constant 1.000000e+00 : f32
          %31 = vector.broadcast %cst : f32 to vector<2x1024xf32>
          %32 = arith.subf %31, %16 : vector<2x1024xf32>
          scf.yield %32 : vector<2x1024xf32>
        } else {
          %31 = arith.mulf %16, %16 : vector<2x1024xf32>
          scf.yield %31 : vector<2x1024xf32>
        }
        scf.yield %30 : vector<2x1024xf32>
      }
      scf.yield %26 : vector<2x1024xf32>
    } else {
      scf.yield %16 : vector<2x1024xf32>
    }
    %c0_7 = arith.constant 0 : index
    %c0_8 = arith.constant 0 : index
    %22 = vector.load %arg4[%c0_7, %c0_8] : memref<2x1024xf32, #tpu.memory_space<vmem>>, vector<2x1024xf32>
    tpu.vector_store %arg4[%c0_7, %c0_8], %21 {strides = array<i32>} : memref<2x1024xf32, #tpu.memory_space<vmem>>, vector<2x1024xf32>,
    return
  }
  func.func @transform_0(%arg0: i32, %arg1: memref<4xi32, #tpu.memory_space<smem>>, %arg2: memref<1xi32, #tpu.memory_space<smem>>) -> (i32, i32) {
    %c0_i32 = arith.constant 0 : i32
    %c0_i32_0 = arith.constant 0 : i32
    return %arg0, %c0_i32 : i32, i32
  }
  func.func @transform_1(%arg0: i32, %arg1: memref<4xi32, #tpu.memory_space<smem>>, %arg2: memref<1xi32, #tpu.memory_space<smem>>) -> (i32, i32) {
    %c0_i32 = arith.constant 0 : i32
    %c0_i32_0 = arith.constant 0 : i32
    return %arg0, %c0_i32 : i32, i32
  }
}

</mosaic_0001>

<llo_original>
// kernel: _random_apply_fused.1
$region0: #{_random_apply_fused.1}
  #allocation0 [shape = 'u32[]', space=smem, size = 0x4, offset = 0x4, fixed_abs, tag = 'smem constant byte address 0x4 - core index']
  #allocation1 [shape = 'u32[144,128]{1,0:T(1,128)}', space=vmem, size = 0x12000, scoped, tag = 'internal scratch']
  #allocation2 [shape = 's32[1]{0}', space=sflag, size = 0x4, scoped, tag = 'scoped memory for _random_apply_fused.1']
  #allocation3 [shape = 'u8[512]{0}', space=smem, size = 0x200, scoped, tag = 'prefetched SMEM operand 0']
  #allocation4 [shape = 's32[1]{0:T(128)S(6)}', space=smem, size = 0x200, scoped, tag = 'prefetched SMEM operand 1']
  %s0 = inlined_call_operand.vmem [shape: s32[4], index: 0, kind: input, shape index: {}]
  %s1 = inlined_call_operand.<no memory space> [shape: s32[1], index: 1, kind: input, shape index: {}]
  %s2 = inlined_call_operand.vmem [shape: f32[2,1024], index: 2, kind: input, shape index: {}]
  %s3 = inlined_call_operand.vmem [shape: f32[2,1024], index: 3, kind: output, shape index: {}]
  %s4 = sld [smem:[#allocation0]]
  $region142: #{_random_apply_fused.1} parent=0
    _
  %s6 = ssub.s32 1, %s4
  %s7 = scalar_select 0, %s6, %s4
  %s8 = sshll.u32 %s0, 4
  %s9 = int_to_ptr.vmem [resolvable:$true] %s8
  %11 = dma.vmem_to_smem %s9, 16, [#allocation3], [#allocation2]
  %12 = sst [smem:[#allocation4]] %s1
  %13 = dma.done [#allocation2], 16
  %14 = sfence
  // Predicated region
  $region2: #{_random_apply_fused.1} parent=0 // pred_check
    _
  $region3: #{_random_apply_fused.1} parent=0 // pred_check_branch
    %16 = sbr.rel (0) target = $region5
  $region4: #{_random_apply_fused.1} parent=0 // pred_region
    _
  $region5: #{_random_apply_fused.1} parent=0 // pred_fallthru
    _
  %v17 = vld [vmem:[%s2] sm:$0xff]
  %v18 = vld [vmem:[%s2 + $0x8] sm:$0xff]
  %s19 = sld [smem:[#allocation4]]
  %s20 = sld [smem:[#allocation3]]
  %p21 = scmp.gt.s32.totalorder %s19, 0
  // Predicated region
  $region6: #{_random_apply_fused.1} parent=0 // pred_check
    %p22 = pneg %p21
  $region7: #{_random_apply_fused.1} parent=0 // pred_check_branch
    %24 = sbr.rel (%p22) target = $region9
  $region8: #{_random_apply_fused.1} parent=0 // pred_region
    %p25 = scmp.lt.s32.totalorder %s20, 2
    // Predicated region
    $region10: #{_random_apply_fused.1} parent=8 // pred_check
      %p26 = pneg %p25
    $region11: #{_random_apply_fused.1} parent=8 // pred_check_branch
      %28 = sbr.rel (%p26) target = $region13
    $region12: #{_random_apply_fused.1} parent=8 // pred_region
      %p29 = scmp.eq.s32.totalorder %s20, 0
      // Predicated region
      $region14: #{_random_apply_fused.1} parent=12 // pred_check
        %p30 = pneg %p29
      $region15: #{_random_apply_fused.1} parent=12 // pred_check_branch
        %32 = sbr.rel (%p30) target = $region17
      $region16: #{_random_apply_fused.1} parent=12 // pred_region
        %v33 = vmul.f32 %v17, 1.2
        %v34 = vmul.f32 %v18, 1.2
      $region17: #{_random_apply_fused.1} parent=12 // pred_fallthru
        %v35 = vphi 0, %v33
        %v36 = vphi 0, %v34
      %p37 = pneg %p29
      // Predicated region
      $region18: #{_random_apply_fused.1} parent=12 // pred_check
        _
      $region19: #{_random_apply_fused.1} parent=12 // pred_check_branch
        %39 = sbr.rel (%p29) target = $region21
      $region20: #{_random_apply_fused.1} parent=12 // pred_region
        %v42 = vcombine.high %v17, %v17
        %v44 = vunpack.c.l.s4 1983009808
        %v45 = vunpack.c.0.s8 %v44
        %v46 = vlaneseq
        %v47 = vshrl.u32 %v46, 7
        %v48 = vsub.s32 %v45, %v47
        %v49 = vrot.slane %v17, %v48
        %v51 = vunpack.c.l.s4 1983009808
        %v52 = vunpack.c.0.s8 %v51
        %v53 = vlaneseq
        %v54 = vshrl.u32 %v53, 7
        %v55 = vsub.s32 %v52, %v54
        %v56 = vrot.slane %v42, %v55
        %v57 = vcombine.high %v49, %v49
        %v58 = vcombine.high %v56, %v56
        %v59 = vcombine.high %v18, %v18
        %v61 = vunpack.c.l.s4 1983009808
        %v62 = vunpack.c.0.s8 %v61
        %v63 = vlaneseq
        %v64 = vshrl.u32 %v63, 7
        %v65 = vsub.s32 %v62, %v64
        %v66 = vrot.slane %v18, %v65
        %v68 = vunpack.c.l.s4 1983009808
        %v69 = vunpack.c.0.s8 %v68
        %v70 = vlaneseq
        %v71 = vshrl.u32 %v70, 7
        %v72 = vsub.s32 %v69, %v71
        %v73 = vrot.slane %v59, %v72
        %v74 = vcombine.high %v66, %v66
        %v75 = vcombine.high %v73, %v73
        %vm84 = vcmask 1041408
        %v85 = vsel %vm84, %v49, 0.0
        %v86 = vsel %vm84, %v57, 0.0
        %v87 = vadd.f32 %v85, %v86
        %v88 = vsel %vm84, %v56, 0.0
        %v89 = vadd.f32 %v87, %v88
        %v90 = vsel %vm84, %v58, 0.0
        %v91 = vadd.f32 %v89, %v90
        %v92 = vsel %vm84, %v66, 0.0
        %v93 = vadd.f32 %v91, %v92
        %v94 = vsel %vm84, %v74, 0.0
        %v95 = vadd.f32 %v93, %v94
        %v96 = vsel %vm84, %v73, 0.0
        %v97 = vadd.f32 %v95, %v96
        %v98 = vsel %vm84, %v75, 0.0
        %v99 = vadd.f32 %v97, %v98
        %100 = vadd.xlane.f32.xlu0 %v99
        %v101 = vpop.xlane.xlu0 %100
        %v102 = vrcp.pop 1024.0
        %v103 = vmul.f32 %v101, %v102
        %v106 = vunpack.c.l.s4 269488144
        %v107 = vunpack.c.0.s8 %v106
        %v108 = vlaneseq
        %v109 = vshrl.u32 %v108, 7
        %v110 = vsub.s32 %v107, %v109
        %v111 = vrot.slane %v103, %v110
        %v113 = vsub.f32 %v17, %v111
        %v114 = vsub.f32 %v18, %v111
        %v115 = vmul.f32 %v113, 1.5
        %v116 = vmul.f32 %v114, 1.5
        %v117 = vadd.f32 %v115, %v111
        %v118 = vadd.f32 %v116, %v111
      $region21: #{_random_apply_fused.1} parent=12 // pred_fallthru
        %v119 = vphi %v35, %v117
        %v120 = vphi %v36, %v118
    $region13: #{_random_apply_fused.1} parent=8 // pred_fallthru
      %v121 = vphi 0, %v119
      %v122 = vphi 0, %v120
    %p123 = pneg %p25
    // Predicated region
    $region22: #{_random_apply_fused.1} parent=8 // pred_check
      _
    $region23: #{_random_apply_fused.1} parent=8 // pred_check_branch
      %125 = sbr.rel (%p25) target = $region25
    $region24: #{_random_apply_fused.1} parent=8 // pred_region
      %p126 = scmp.eq.s32.totalorder %s20, 2
      // Predicated region
      $region26: #{_random_apply_fused.1} parent=24 // pred_check
        %p127 = pneg %p126
      $region27: #{_random_apply_fused.1} parent=24 // pred_check_branch
        %129 = sbr.rel (%p127) target = $region29
      $region28: #{_random_apply_fused.1} parent=24 // pred_region
        %v130 = vsub.f32 1.0, %v17
        %v131 = vsub.f32 1.0, %v18
      $region29: #{_random_apply_fused.1} parent=24 // pred_fallthru
        %v132 = vphi 0, %v130
        %v133 = vphi 0, %v131
      %p134 = pneg %p126
      // Predicated region
      $region30: #{_random_apply_fused.1} parent=24 // pred_check
        _
      $region31: #{_random_apply_fused.1} parent=24 // pred_check_branch
        %136 = sbr.rel (%p126) target = $region33
      $region32: #{_random_apply_fused.1} parent=24 // pred_region
        %v137 = vmul.f32 %v17, %v17
        %v138 = vmul.f32 %v18, %v18
      $region33: #{_random_apply_fused.1} parent=24 // pred_fallthru
        %v139 = vphi %v132, %v137
        %v140 = vphi %v133, %v138
    $region25: #{_random_apply_fused.1} parent=8 // pred_fallthru
      %v141 = vphi %v121, %v139
      %v142 = vphi %v122, %v140
  $region9: #{_random_apply_fused.1} parent=0 // pred_fallthru
    %v143 = vphi 0, %v141
    %v144 = vphi 0, %v142
  %p145 = pneg %p21
  // Predicated region
  $region34: #{_random_apply_fused.1} parent=0 // pred_check
    _
  $region35: #{_random_apply_fused.1} parent=0 // pred_check_branch
    %147 = sbr.rel (%p21) target = $region37
  $region36: #{_random_apply_fused.1} parent=0 // pred_region
    _
  $region37: #{_random_apply_fused.1} parent=0 // pred_fallthru
    %v148 = vphi %v143, %v17
    %v149 = vphi %v144, %v18
  %s150 = sld [smem:[#allocation3 + $0x1]]
  %p151 = scmp.gt.s32.totalorder %s19, 1
  // Predicated region
  $region38: #{_random_apply_fused.1} parent=0 // pred_check
    %p152 = pneg %p151
  $region39: #{_random_apply_fused.1} parent=0 // pred_check_branch
    %154 = sbr.rel (%p152) target = $region41
  $region40: #{_random_apply_fused.1} parent=0 // pred_region
    %p155 = scmp.lt.s32.totalorder %s150, 2
    // Predicated region
    $region42: #{_random_apply_fused.1} parent=40 // pred_check
      %p156 = pneg %p155
    $region43: #{_random_apply_fused.1} parent=40 // pred_check_branch
      %158 = sbr.rel (%p156) target = $region45
    $region44: #{_random_apply_fused.1} parent=40 // pred_region
      %p159 = scmp.eq.s32.totalorder %s150, 0
      // Predicated region
      $region46: #{_random_apply_fused.1} parent=44 // pred_check
        %p160 = pneg %p159
      $region47: #{_random_apply_fused.1} parent=44 // pred_check_branch
        %162 = sbr.rel (%p160) target = $region49
      $region48: #{_random_apply_fused.1} parent=44 // pred_region
        %v163 = vmul.f32 %v148, 1.2
        %v164 = vmul.f32 %v149, 1.2
      $region49: #{_random_apply_fused.1} parent=44 // pred_fallthru
        %v165 = vphi 0, %v163
        %v166 = vphi 0, %v164
      %p167 = pneg %p159
      // Predicated region
      $region50: #{_random_apply_fused.1} parent=44 // pred_check
        _
      $region51: #{_random_apply_fused.1} parent=44 // pred_check_branch
        %169 = sbr.rel (%p159) target = $region53
      $region52: #{_random_apply_fused.1} parent=44 // pred_region
        %v172 = vcombine.high %v148, %v148
        %v174 = vunpack.c.l.s4 1983009808
        %v175 = vunpack.c.0.s8 %v174
        %v176 = vlaneseq
        %v177 = vshrl.u32 %v176, 7
        %v178 = vsub.s32 %v175, %v177
        %v179 = vrot.slane %v148, %v178
        %v181 = vunpack.c.l.s4 1983009808
        %v182 = vunpack.c.0.s8 %v181
        %v183 = vlaneseq
        %v184 = vshrl.u32 %v183, 7
        %v185 = vsub.s32 %v182, %v184
        %v186 = vrot.slane %v172, %v185
        %v187 = vcombine.high %v179, %v179
        %v188 = vcombine.high %v186, %v186
        %v189 = vcombine.high %v149, %v149
        %v191 = vunpack.c.l.s4 1983009808
        %v192 = vunpack.c.0.s8 %v191
        %v193 = vlaneseq
        %v194 = vshrl.u32 %v193, 7
        %v195 = vsub.s32 %v192, %v194
        %v196 = vrot.slane %v149, %v195
        %v198 = vunpack.c.l.s4 1983009808
        %v199 = vunpack.c.0.s8 %v198
        %v200 = vlaneseq
        %v201 = vshrl.u32 %v200, 7
        %v202 = vsub.s32 %v199, %v201
        %v203 = vrot.slane %v189, %v202
        %v204 = vcombine.high %v196, %v196
        %v205 = vcombine.high %v203, %v203
        %vm214 = vcmask 1041408
        %v215 = vsel %vm214, %v179, 0.0
        %v216 = vsel %vm214, %v187, 0.0
        %v217 = vadd.f32 %v215, %v216
        %v218 = vsel %vm214, %v186, 0.0
        %v219 = vadd.f32 %v217, %v218
        %v220 = vsel %vm214, %v188, 0.0
        %v221 = vadd.f32 %v219, %v220
        %v222 = vsel %vm214, %v196, 0.0
        %v223 = vadd.f32 %v221, %v222
        %v224 = vsel %vm214, %v204, 0.0
        %v225 = vadd.f32 %v223, %v224
        %v226 = vsel %vm214, %v203, 0.0
        %v227 = vadd.f32 %v225, %v226
        %v228 = vsel %vm214, %v205, 0.0
        %v229 = vadd.f32 %v227, %v228
        %230 = vadd.xlane.f32.xlu0 %v229
        %v231 = vpop.xlane.xlu0 %230
        %v232 = vrcp.pop 1024.0
        %v233 = vmul.f32 %v231, %v232
        %v236 = vunpack.c.l.s4 269488144
        %v237 = vunpack.c.0.s8 %v236
        %v238 = vlaneseq
        %v239 = vshrl.u32 %v238, 7
        %v240 = vsub.s32 %v237, %v239
        %v241 = vrot.slane %v233, %v240
        %v243 = vsub.f32 %v148, %v241
        %v244 = vsub.f32 %v149, %v241
        %v245 = vmul.f32 %v243, 1.5
        %v246 = vmul.f32 %v244, 1.5
        %v247 = vadd.f32 %v245, %v241
        %v248 = vadd.f32 %v246, %v241
      $region53: #{_random_apply_fused.1} parent=44 // pred_fallthru
        %v249 = vphi %v165, %v247
        %v250 = vphi %v166, %v248
    $region45: #{_random_apply_fused.1} parent=40 // pred_fallthru
      %v251 = vphi 0, %v249
      %v252 = vphi 0, %v250
    %p253 = pneg %p155
    // Predicated region
    $region54: #{_random_apply_fused.1} parent=40 // pred_check
      _
    $region55: #{_random_apply_fused.1} parent=40 // pred_check_branch
      %255 = sbr.rel (%p155) target = $region57
    $region56: #{_random_apply_fused.1} parent=40 // pred_region
      %p256 = scmp.eq.s32.totalorder %s150, 2
      // Predicated region
      $region58: #{_random_apply_fused.1} parent=56 // pred_check
        %p257 = pneg %p256
      $region59: #{_random_apply_fused.1} parent=56 // pred_check_branch
        %259 = sbr.rel (%p257) target = $region61
      $region60: #{_random_apply_fused.1} parent=56 // pred_region
        %v260 = vsub.f32 1.0, %v148
        %v261 = vsub.f32 1.0, %v149
      $region61: #{_random_apply_fused.1} parent=56 // pred_fallthru
        %v262 = vphi 0, %v260
        %v263 = vphi 0, %v261
      %p264 = pneg %p256
      // Predicated region
      $region62: #{_random_apply_fused.1} parent=56 // pred_check
        _
      $region63: #{_random_apply_fused.1} parent=56 // pred_check_branch
        %266 = sbr.rel (%p256) target = $region65
      $region64: #{_random_apply_fused.1} parent=56 // pred_region
        %v267 = vmul.f32 %v148, %v148
        %v268 = vmul.f32 %v149, %v149
      $region65: #{_random_apply_fused.1} parent=56 // pred_fallthru
        %v269 = vphi %v262, %v267
        %v270 = vphi %v263, %v268
    $region57: #{_random_apply_fused.1} parent=40 // pred_fallthru
      %v271 = vphi %v251, %v269
      %v272 = vphi %v252, %v270
  $region41: #{_random_apply_fused.1} parent=0 // pred_fallthru
    %v273 = vphi 0, %v271
    %v274 = vphi 0, %v272
  %p275 = pneg %p151
  // Predicated region
  $region66: #{_random_apply_fused.1} parent=0 // pred_check
    _
  $region67: #{_random_apply_fused.1} parent=0 // pred_check_branch
    %277 = sbr.rel (%p151) target = $region69
  $region68: #{_random_apply_fused.1} parent=0 // pred_region
    _
  $region69: #{_random_apply_fused.1} parent=0 // pred_fallthru
    %v278 = vphi %v273, %v148
    %v279 = vphi %v274, %v149
  %s280 = sld [smem:[#allocation3 + $0x2]]
  %p281 = scmp.gt.s32.totalorder %s19, 2
  // Predicated region
  $region70: #{_random_apply_fused.1} parent=0 // pred_check
    %p282 = pneg %p281
  $region71: #{_random_apply_fused.1} parent=0 // pred_check_branch
    %284 = sbr.rel (%p282) target = $region73
  $region72: #{_random_apply_fused.1} parent=0 // pred_region
    %p285 = scmp.lt.s32.totalorder %s280, 2
    // Predicated region
    $region74: #{_random_apply_fused.1} parent=72 // pred_check
      %p286 = pneg %p285
    $region75: #{_random_apply_fused.1} parent=72 // pred_check_branch
      %288 = sbr.rel (%p286) target = $region77
    $region76: #{_random_apply_fused.1} parent=72 // pred_region
      %p289 = scmp.eq.s32.totalorder %s280, 0
      // Predicated region
      $region78: #{_random_apply_fused.1} parent=76 // pred_check
        %p290 = pneg %p289
      $region79: #{_random_apply_fused.1} parent=76 // pred_check_branch
        %292 = sbr.rel (%p290) target = $region81
      $region80: #{_random_apply_fused.1} parent=76 // pred_region
        %v293 = vmul.f32 %v278, 1.2
        %v294 = vmul.f32 %v279, 1.2
      $region81: #{_random_apply_fused.1} parent=76 // pred_fallthru
        %v295 = vphi 0, %v293
        %v296 = vphi 0, %v294
      %p297 = pneg %p289
      // Predicated region
      $region82: #{_random_apply_fused.1} parent=76 // pred_check
        _
      $region83: #{_random_apply_fused.1} parent=76 // pred_check_branch
        %299 = sbr.rel (%p289) target = $region85
      $region84: #{_random_apply_fused.1} parent=76 // pred_region
        %v302 = vcombine.high %v278, %v278
        %v304 = vunpack.c.l.s4 1983009808
        %v305 = vunpack.c.0.s8 %v304
        %v306 = vlaneseq
        %v307 = vshrl.u32 %v306, 7
        %v308 = vsub.s32 %v305, %v307
        %v309 = vrot.slane %v278, %v308
        %v311 = vunpack.c.l.s4 1983009808
        %v312 = vunpack.c.0.s8 %v311
        %v313 = vlaneseq
        %v314 = vshrl.u32 %v313, 7
        %v315 = vsub.s32 %v312, %v314
        %v316 = vrot.slane %v302, %v315
        %v317 = vcombine.high %v309, %v309
        %v318 = vcombine.high %v316, %v316
        %v319 = vcombine.high %v279, %v279
        %v321 = vunpack.c.l.s4 1983009808
        %v322 = vunpack.c.0.s8 %v321
        %v323 = vlaneseq
        %v324 = vshrl.u32 %v323, 7
        %v325 = vsub.s32 %v322, %v324
        %v326 = vrot.slane %v279, %v325
        %v328 = vunpack.c.l.s4 1983009808
        %v329 = vunpack.c.0.s8 %v328
        %v330 = vlaneseq
        %v331 = vshrl.u32 %v330, 7
        %v332 = vsub.s32 %v329, %v331
        %v333 = vrot.slane %v319, %v332
        %v334 = vcombine.high %v326, %v326
        %v335 = vcombine.high %v333, %v333
        %vm344 = vcmask 1041408
        %v345 = vsel %vm344, %v309, 0.0
        %v346 = vsel %vm344, %v317, 0.0
        %v347 = vadd.f32 %v345, %v346
        %v348 = vsel %vm344, %v316, 0.0
        %v349 = vadd.f32 %v347, %v348
        %v350 = vsel %vm344, %v318, 0.0
        %v351 = vadd.f32 %v349, %v350
        %v352 = vsel %vm344, %v326, 0.0
        %v353 = vadd.f32 %v351, %v352
        %v354 = vsel %vm344, %v334, 0.0
        %v355 = vadd.f32 %v353, %v354
        %v356 = vsel %vm344, %v333, 0.0
        %v357 = vadd.f32 %v355, %v356
        %v358 = vsel %vm344, %v335, 0.0
        %v359 = vadd.f32 %v357, %v358
        %360 = vadd.xlane.f32.xlu0 %v359
        %v361 = vpop.xlane.xlu0 %360
        %v362 = vrcp.pop 1024.0
        %v363 = vmul.f32 %v361, %v362
        %v366 = vunpack.c.l.s4 269488144
        %v367 = vunpack.c.0.s8 %v366
        %v368 = vlaneseq
        %v369 = vshrl.u32 %v368, 7
        %v370 = vsub.s32 %v367, %v369
        %v371 = vrot.slane %v363, %v370
        %v373 = vsub.f32 %v278, %v371
        %v374 = vsub.f32 %v279, %v371
        %v375 = vmul.f32 %v373, 1.5
        %v376 = vmul.f32 %v374, 1.5
        %v377 = vadd.f32 %v375, %v371
        %v378 = vadd.f32 %v376, %v371
      $region85: #{_random_apply_fused.1} parent=76 // pred_fallthru
        %v379 = vphi %v295, %v377
        %v380 = vphi %v296, %v378
    $region77: #{_random_apply_fused.1} parent=72 // pred_fallthru
      %v381 = vphi 0, %v379
      %v382 = vphi 0, %v380
    %p383 = pneg %p285
    // Predicated region
    $region86: #{_random_apply_fused.1} parent=72 // pred_check
      _
    $region87: #{_random_apply_fused.1} parent=72 // pred_check_branch
      %385 = sbr.rel (%p285) target = $region89
    $region88: #{_random_apply_fused.1} parent=72 // pred_region
      %p386 = scmp.eq.s32.totalorder %s280, 2
      // Predicated region
      $region90: #{_random_apply_fused.1} parent=88 // pred_check
        %p387 = pneg %p386
      $region91: #{_random_apply_fused.1} parent=88 // pred_check_branch
        %389 = sbr.rel (%p387) target = $region93
      $region92: #{_random_apply_fused.1} parent=88 // pred_region
        %v390 = vsub.f32 1.0, %v278
        %v391 = vsub.f32 1.0, %v279
      $region93: #{_random_apply_fused.1} parent=88 // pred_fallthru
        %v392 = vphi 0, %v390
        %v393 = vphi 0, %v391
      %p394 = pneg %p386
      // Predicated region
      $region94: #{_random_apply_fused.1} parent=88 // pred_check
        _
      $region95: #{_random_apply_fused.1} parent=88 // pred_check_branch
        %396 = sbr.rel (%p386) target = $region97
      $region96: #{_random_apply_fused.1} parent=88 // pred_region
        %v397 = vmul.f32 %v278, %v278
        %v398 = vmul.f32 %v279, %v279
      $region97: #{_random_apply_fused.1} parent=88 // pred_fallthru
        %v399 = vphi %v392, %v397
        %v400 = vphi %v393, %v398
    $region89: #{_random_apply_fused.1} parent=72 // pred_fallthru
      %v401 = vphi %v381, %v399
      %v402 = vphi %v382, %v400
  $region73: #{_random_apply_fused.1} parent=0 // pred_fallthru
    %v403 = vphi 0, %v401
    %v404 = vphi 0, %v402
  %p405 = pneg %p281
  // Predicated region
  $region98: #{_random_apply_fused.1} parent=0 // pred_check
    _
  $region99: #{_random_apply_fused.1} parent=0 // pred_check_branch
    %407 = sbr.rel (%p281) target = $region101
  $region100: #{_random_apply_fused.1} parent=0 // pred_region
    _
  $region101: #{_random_apply_fused.1} parent=0 // pred_fallthru
    %v408 = vphi %v403, %v278
    %v409 = vphi %v404, %v279
  %s410 = sld [smem:[#allocation3 + $0x3]]
  %p411 = scmp.gt.s32.totalorder %s19, 3
  // Predicated region
  $region102: #{_random_apply_fused.1} parent=0 // pred_check
    %p412 = pneg %p411
  $region103: #{_random_apply_fused.1} parent=0 // pred_check_branch
    %414 = sbr.rel (%p412) target = $region105
  $region104: #{_random_apply_fused.1} parent=0 // pred_region
    %p415 = scmp.lt.s32.totalorder %s410, 2
    // Predicated region
    $region106: #{_random_apply_fused.1} parent=104 // pred_check
      %p416 = pneg %p415
    $region107: #{_random_apply_fused.1} parent=104 // pred_check_branch
      %418 = sbr.rel (%p416) target = $region109
    $region108: #{_random_apply_fused.1} parent=104 // pred_region
      %p419 = scmp.eq.s32.totalorder %s410, 0
      // Predicated region
      $region110: #{_random_apply_fused.1} parent=108 // pred_check
        %p420 = pneg %p419
      $region111: #{_random_apply_fused.1} parent=108 // pred_check_branch
        %422 = sbr.rel (%p420) target = $region113
      $region112: #{_random_apply_fused.1} parent=108 // pred_region
        %v423 = vmul.f32 %v408, 1.2
        %v424 = vmul.f32 %v409, 1.2
      $region113: #{_random_apply_fused.1} parent=108 // pred_fallthru
        %v425 = vphi 0, %v423
        %v426 = vphi 0, %v424
      %p427 = pneg %p419
      // Predicated region
      $region114: #{_random_apply_fused.1} parent=108 // pred_check
        _
      $region115: #{_random_apply_fused.1} parent=108 // pred_check_branch
        %429 = sbr.rel (%p419) target = $region117
      $region116: #{_random_apply_fused.1} parent=108 // pred_region
        %v432 = vcombine.high %v408, %v408
        %v434 = vunpack.c.l.s4 1983009808
        %v435 = vunpack.c.0.s8 %v434
        %v436 = vlaneseq
        %v437 = vshrl.u32 %v436, 7
        %v438 = vsub.s32 %v435, %v437
        %v439 = vrot.slane %v408, %v438
        %v441 = vunpack.c.l.s4 1983009808
        %v442 = vunpack.c.0.s8 %v441
        %v443 = vlaneseq
        %v444 = vshrl.u32 %v443, 7
        %v445 = vsub.s32 %v442, %v444
        %v446 = vrot.slane %v432, %v445
        %v447 = vcombine.high %v439, %v439
        %v448 = vcombine.high %v446, %v446
        %v449 = vcombine.high %v409, %v409
        %v451 = vunpack.c.l.s4 1983009808
        %v452 = vunpack.c.0.s8 %v451
        %v453 = vlaneseq
        %v454 = vshrl.u32 %v453, 7
        %v455 = vsub.s32 %v452, %v454
        %v456 = vrot.slane %v409, %v455
        %v458 = vunpack.c.l.s4 1983009808
        %v459 = vunpack.c.0.s8 %v458
        %v460 = vlaneseq
        %v461 = vshrl.u32 %v460, 7
        %v462 = vsub.s32 %v459, %v461
        %v463 = vrot.slane %v449, %v462
        %v464 = vcombine.high %v456, %v456
        %v465 = vcombine.high %v463, %v463
        %vm474 = vcmask 1041408
        %v475 = vsel %vm474, %v439, 0.0
        %v476 = vsel %vm474, %v447, 0.0
        %v477 = vadd.f32 %v475, %v476
        %v478 = vsel %vm474, %v446, 0.0
        %v479 = vadd.f32 %v477, %v478
        %v480 = vsel %vm474, %v448, 0.0
        %v481 = vadd.f32 %v479, %v480
        %v482 = vsel %vm474, %v456, 0.0
        %v483 = vadd.f32 %v481, %v482
        %v484 = vsel %vm474, %v464, 0.0
        %v485 = vadd.f32 %v483, %v484
        %v486 = vsel %vm474, %v463, 0.0
        %v487 = vadd.f32 %v485, %v486
        %v488 = vsel %vm474, %v465, 0.0
        %v489 = vadd.f32 %v487, %v488
        %490 = vadd.xlane.f32.xlu0 %v489
        %v491 = vpop.xlane.xlu0 %490
        %v492 = vrcp.pop 1024.0
        %v493 = vmul.f32 %v491, %v492
        %v496 = vunpack.c.l.s4 269488144
        %v497 = vunpack.c.0.s8 %v496
        %v498 = vlaneseq
        %v499 = vshrl.u32 %v498, 7
        %v500 = vsub.s32 %v497, %v499
        %v501 = vrot.slane %v493, %v500
        %v503 = vsub.f32 %v408, %v501
        %v504 = vsub.f32 %v409, %v501
        %v505 = vmul.f32 %v503, 1.5
        %v506 = vmul.f32 %v504, 1.5
        %v507 = vadd.f32 %v505, %v501
        %v508 = vadd.f32 %v506, %v501
      $region117: #{_random_apply_fused.1} parent=108 // pred_fallthru
        %v509 = vphi %v425, %v507
        %v510 = vphi %v426, %v508
    $region109: #{_random_apply_fused.1} parent=104 // pred_fallthru
      %v511 = vphi 0, %v509
      %v512 = vphi 0, %v510
    %p513 = pneg %p415
    // Predicated region
    $region118: #{_random_apply_fused.1} parent=104 // pred_check
      _
    $region119: #{_random_apply_fused.1} parent=104 // pred_check_branch
      %515 = sbr.rel (%p415) target = $region121
    $region120: #{_random_apply_fused.1} parent=104 // pred_region
      %p516 = scmp.eq.s32.totalorder %s410, 2
      // Predicated region
      $region122: #{_random_apply_fused.1} parent=120 // pred_check
        %p517 = pneg %p516
      $region123: #{_random_apply_fused.1} parent=120 // pred_check_branch
        %519 = sbr.rel (%p517) target = $region125
      $region124: #{_random_apply_fused.1} parent=120 // pred_region
        %v520 = vsub.f32 1.0, %v408
        %v521 = vsub.f32 1.0, %v409
      $region125: #{_random_apply_fused.1} parent=120 // pred_fallthru
        %v522 = vphi 0, %v520
        %v523 = vphi 0, %v521
      %p524 = pneg %p516
      // Predicated region
      $region126: #{_random_apply_fused.1} parent=120 // pred_check
        _
      $region127: #{_random_apply_fused.1} parent=120 // pred_check_branch
        %526 = sbr.rel (%p516) target = $region129
      $region128: #{_random_apply_fused.1} parent=120 // pred_region
        %v527 = vmul.f32 %v408, %v408
        %v528 = vmul.f32 %v409, %v409
      $region129: #{_random_apply_fused.1} parent=120 // pred_fallthru
        %v529 = vphi %v522, %v527
        %v530 = vphi %v523, %v528
    $region121: #{_random_apply_fused.1} parent=104 // pred_fallthru
      %v531 = vphi %v511, %v529
      %v532 = vphi %v512, %v530
  $region105: #{_random_apply_fused.1} parent=0 // pred_fallthru
    %v533 = vphi 0, %v531
    %v534 = vphi 0, %v532
  %p535 = pneg %p411
  // Predicated region
  $region130: #{_random_apply_fused.1} parent=0 // pred_check
    _
  $region131: #{_random_apply_fused.1} parent=0 // pred_check_branch
    %537 = sbr.rel (%p411) target = $region133
  $region132: #{_random_apply_fused.1} parent=0 // pred_region
    _
  $region133: #{_random_apply_fused.1} parent=0 // pred_fallthru
    %v538 = vphi %v533, %v408
    %v539 = vphi %v534, %v409
  %540 = vst [vmem:[%s3] sm:$0xff] %v538
  %541 = vst [vmem:[%s3 + $0x8] sm:$0xff] %v539
  // Predicated region
  $region134: #{_random_apply_fused.1} parent=0 // pred_check
    _
  $region135: #{_random_apply_fused.1} parent=0 // pred_check_branch
    %543 = sbr.rel (0) target = $region137
  $region136: #{_random_apply_fused.1} parent=0 // pred_region
    _
  $region137: #{_random_apply_fused.1} parent=0 // pred_fallthru
    _
  // Predicated region
  $region138: #{_random_apply_fused.1} parent=0 // pred_check
    _
  $region139: #{_random_apply_fused.1} parent=0 // pred_check_branch
    %545 = sbr.rel (0) target = $region141
  $region140: #{_random_apply_fused.1} parent=0 // pred_region
    _
  $region141: #{_random_apply_fused.1} parent=0 // pred_fallthru
    _

</llo_original>
